<compile_context>
chip_gen: v6e
topology: v6e:2x2x1
jax: 0.10.0
libtpu: 0.0.40
codegen_flags: <defaults>
</compile_context>

<pallas_src>
import functools
import numpy as np
import jax
import jax.numpy as jnp
from jax.experimental import pallas as pl
from jax.experimental.pallas import tpu as pltpu


def _time_encode_kernel(t_ref, w_ref, o_ref):
    # t_ref: (tile_rows, 1) f32; w_ref: (1, dim) f32; o_ref: (tile_rows, dim) f32.
    # Fused broadcast-multiply + cos + store, all in one pipeline stage.
    o_ref[...] = jnp.cos(t_ref[...] * w_ref[...])


def time_encode(t, w, *, max_block_rows=512):
    """cos(t.reshape(-1, 1) * w[None, :]) as one fused Pallas kernel.

    t: any shape (flattened, matching torch's t.reshape(-1, 1)); w: (dim,).
    Returns (t.size, dim) float32.
    """
    t_flat = jnp.asarray(t, jnp.float32).reshape(-1)
    w_row = jnp.asarray(w, jnp.float32).reshape(1, -1)
    e = t_flat.shape[0]
    dim = w_row.shape[1]

    # Row tile: multiple of 8 (sublane granule), capped so a (tile_rows, dim)
    # f32 block stays tiny even under v7x's smaller scoped VMEM.
    tile_rows = min(max_block_rows, 8 * pl.cdiv(e, 8))
    e_pad = tile_rows * pl.cdiv(e, tile_rows)
    t_col = t_flat.reshape(e, 1)
    if e_pad != e:
        t_col = jnp.pad(t_col, ((0, e_pad - e), (0, 0)))

    out = pl.pallas_call(
        _time_encode_kernel,
        grid=(e_pad // tile_rows,),
        in_specs=[
            pl.BlockSpec((tile_rows, 1), lambda i: (i, 0)),   # timestamps (sublane)
            pl.BlockSpec((1, dim), lambda i: (0, 0)),         # fixed freq weights
        ],
        out_specs=pl.BlockSpec((tile_rows, dim), lambda i: (i, 0)),  # dim on lanes
        out_shape=jax.ShapeDtypeStruct((e_pad, dim), jnp.float32),
        compiler_params=pltpu.CompilerParams(
            dimension_semantics=("parallel",),  # row tiles independent -> both TCs on v7x
        ),
    )(t_col, w_row)
    return out[:e]


def make_time_encode_weight(dim, step=10):
    # Matches the fixed (dim, 1) weight of nn.Linear(1, dim, bias=False):
    # 1 / step**linspace(0, step-1, dim).
    return jnp.asarray(
        1.0 / step ** np.linspace(0, step - 1, dim, dtype=np.float32))


if __name__ == "__main__":
    key = jax.random.PRNGKey(0)

    # Small shapes consistent with the module: 50 timestamps, dim=32 channels.
    E, DIM = 50, 32
    t = jax.random.uniform(key, (E,), jnp.float32) * 10.0
    w = make_time_encode_weight(DIM)

    fwd = jax.jit(functools.partial(time_encode, w=w))
    out = jax.block_until_ready(fwd(t))

    # Pure-jnp reference of the module's forward semantics.
    ref = jnp.cos(t.reshape(-1, 1) * w.reshape(1, -1))
    assert out.shape == (E, DIM)
    assert bool(jnp.all(jnp.isfinite(out)))
    assert bool(jnp.allclose(out, ref, atol=1e-6, rtol=1e-6))
    print("KERNEL_OK")
</pallas_src>

<mosaic_0001>
module attributes {stable_mosaic.version = 11 : i64} {
  func.func @_time_encode_kernel(%arg0: i32, %arg1: memref<56x1xf32, #tpu.memory_space<vmem>>, %arg2: memref<1x32xf32, #tpu.memory_space<vmem>>, %arg3: memref<56x32xf32, #tpu.memory_space<vmem>>) attributes {dimension_semantics = [#tpu.dimension_semantics<parallel>], iteration_bounds = array<i64: 1>, scalar_prefetch = 0 : i64, scratch_operands = 0 : i64, tpu.core_type = #tpu.core_type<tc>, window_params = [{transform_indices = @transform_0, window_bounds = array<i64: 56, 1>}, {pipeline_mode = #tpu.pipeline_mode<synchronous>, transform_indices = @transform_1, window_bounds = array<i64: 1, 32>}, {transform_indices = @transform_2, window_bounds = array<i64: 56, 32>}]} {
    %c0 = arith.constant 0 : index
    %c0_0 = arith.constant 0 : index
    %0 = vector.load %arg1[%c0, %c0_0] : memref<56x1xf32, #tpu.memory_space<vmem>>, vector<56x1xf32>
    %c0_1 = arith.constant 0 : index
    %c0_2 = arith.constant 0 : index
    %1 = vector.load %arg2[%c0_1, %c0_2] : memref<1x32xf32, #tpu.memory_space<vmem>>, vector<1x32xf32>
    %2 = vector.broadcast %0 : vector<56x1xf32> to vector<56x32xf32>
    %3 = vector.broadcast %1 : vector<1x32xf32> to vector<56x32xf32>
    %4 = arith.mulf %2, %3 : vector<56x32xf32>
    %5 = math.cos %4 : vector<56x32xf32>
    %c0_3 = arith.constant 0 : index
    %c0_4 = arith.constant 0 : index
    %6 = vector.load %arg3[%c0_3, %c0_4] : memref<56x32xf32, #tpu.memory_space<vmem>>, vector<56x32xf32>
    tpu.vector_store %arg3[%c0_3, %c0_4], %5 {strides = array<i32>} : memref<56x32xf32, #tpu.memory_space<vmem>>, vector<56x32xf32>,
    return
  }
  func.func @transform_0(%arg0: i32) -> (i32, i32) {
    %c0_i32 = arith.constant 0 : i32
    %c0_i32_0 = arith.constant 0 : i32
    return %arg0, %c0_i32 : i32, i32
  }
  func.func @transform_1(%arg0: i32) -> (i32, i32) {
    %c0_i32 = arith.constant 0 : i32
    %c0_i32_0 = arith.constant 0 : i32
    %c0_i32_1 = arith.constant 0 : i32
    return %c0_i32, %c0_i32_0 : i32, i32
  }
  func.func @transform_2(%arg0: i32) -> (i32, i32) {
    %c0_i32 = arith.constant 0 : i32
    %c0_i32_0 = arith.constant 0 : i32
    return %arg0, %c0_i32 : i32, i32
  }
}

</mosaic_0001>

<llo_original>
// kernel: time_encode.1
$region0: #{time_encode.1}
  #allocation0 [shape = 'u32[]', space=smem, size = 0x4, offset = 0x4, fixed_abs, tag = 'smem constant byte address 0x4 - core index']
  #allocation1 [shape = 'u32[144,128]{1,0:T(1,128)}', space=vmem, size = 0x12000, scoped, tag = 'internal scratch']
  %s0 = inlined_call_operand.vmem [shape: f32[56,1], index: 0, kind: input, shape index: {}]
  %s1 = inlined_call_operand.vmem [shape: f32[1,32], index: 1, kind: input, shape index: {}]
  %s2 = inlined_call_operand.vmem [shape: f32[56,32], index: 2, kind: output, shape index: {}]
  %s3 = sld [smem:[#allocation0]]
  $region18: #{time_encode.1} parent=0
    _
  %s5 = ssub.s32 1, %s3
  %s6 = scalar_select 0, %s5, %s3
  // Predicated region
  $region2: #{time_encode.1} parent=0 // pred_check
    _
  $region3: #{time_encode.1} parent=0 // pred_check_branch
    %8 = sbr.rel (0) target = $region5
  $region4: #{time_encode.1} parent=0 // pred_region
    _
  $region5: #{time_encode.1} parent=0 // pred_fallthru
    _
  // Predicated region
  $region6: #{time_encode.1} parent=0 // pred_check
    _
  $region7: #{time_encode.1} parent=0 // pred_check_branch
    %10 = sbr.rel (0) target = $region9
  $region8: #{time_encode.1} parent=0 // pred_region
    _
  $region9: #{time_encode.1} parent=0 // pred_fallthru
    _
  %v11 = vld [vmem:[%s0] sm:$0xff]
  %v12 = vld [vmem:[%s0 + $0x8] sm:$0xff]
  %v13 = vld [vmem:[%s0 + $0x10] sm:$0xff]
  %v14 = vld [vmem:[%s0 + $0x18] sm:$0xff]
  %v15 = vld [vmem:[%s0 + $0x20] sm:$0xff]
  %v16 = vld [vmem:[%s0 + $0x28] sm:$0xff]
  %v17 = vld [vmem:[%s0 + $0x30] sm:$0xff]
  %v18 = vld [vmem:[%s1] sm:$0x1]
  %20 = vset.pattern.permute.xlu0 0
  %21 = vperm.xlu0 %20, %v11
  %v22 = vpop.permute.xlu0 %21
  %25 = vset.pattern.permute.xlu0 0
  %26 = vperm.xlu0 %25, %v12
  %v27 = vpop.permute.xlu0 %26
  %30 = vset.pattern.permute.xlu0 0
  %31 = vperm.xlu0 %30, %v13
  %v32 = vpop.permute.xlu0 %31
  %35 = vset.pattern.permute.xlu0 0
  %36 = vperm.xlu0 %35, %v14
  %v37 = vpop.permute.xlu0 %36
  %40 = vset.pattern.permute.xlu0 0
  %41 = vperm.xlu0 %40, %v15
  %v42 = vpop.permute.xlu0 %41
  %45 = vset.pattern.permute.xlu0 0
  %46 = vperm.xlu0 %45, %v16
  %v47 = vpop.permute.xlu0 %46
  %50 = vset.pattern.permute.xlu0 0
  %51 = vperm.xlu0 %50, %v17
  %v52 = vpop.permute.xlu0 %51
  %v55 = vlaneseq
  %v56 = vshrl.u32 %v55, 7
  %v57 = vsub.s32 0, %v56
  %v58 = vrot.slane %v18, %v57
  %v60 = vmul.f32 %v22, %v58
  %v61 = vmul.f32 %v27, %v58
  %v62 = vmul.f32 %v32, %v58
  %v63 = vmul.f32 %v37, %v58
  %v64 = vmul.f32 %v42, %v58
  %v65 = vmul.f32 %v47, %v58
  %v66 = vmul.f32 %v52, %v58
  %v67 = vand.u32 2147483647, %v60
  %vm68 = vcmp.le.f32.partialorder %v67, 0.7853982
  %vm69 = vcmp.lt.s32.totalorder %v60, 0
  %v70 = vand.u32 %v60, 2139095040
  %v71 = vshrl.u32 %v70, 23
  %v72 = vsub.s32 %v71, 127
  %v73 = vand.u32 2147483647, %v60
  %v74 = vand.u32 %v73, 8388607
  %v75 = vor.u32 %v74, 8388608
  %v76 = vsub.s32 0, %v75
  %v77 = vadd.s32 %v72, 1
  %vm78 = vcmp.gt.s32.totalorder %v77, 0
  %v79 = vsel %vm78, %v77, 0
  %v80 = vshrl.u32 %v79, 5
  %v81 = vand.u32 %v79, 31
  %v82 = vsub.s32 32, %v81
  %v83 = vshrl.u32 683565275, %v82
  %v84 = vshll.u32 683565275, %v81
  %v85 = vshrl.u32 2475754826, %v82
  %v86 = vor.u32 %v84, %v85
  %v87 = vshll.u32 2475754826, %v81
  %v88 = vshrl.u32 2131351028, %v82
  %v89 = vor.u32 %v87, %v88
  %v90 = vshll.u32 2131351028, %v81
  %v91 = vshrl.u32 2102212464, %v82
  %v92 = vor.u32 %v90, %v91
  %v93 = vshll.u32 2102212464, %v81
  %v94 = vshrl.u32 920167782, %v82
  %v95 = vor.u32 %v93, %v94
  %v96 = vshll.u32 920167782, %v81
  %v97 = vshrl.u32 1326507024, %v82
  %v98 = vor.u32 %v96, %v97
  %vm99 = vcmp.lt.s32.totalorder %v80, 1
  %vm100 = vcmp.lt.s32.totalorder %v80, 2
  %vm101 = vcmp.lt.s32.totalorder %v80, 3
  %vm102 = vcmp.lt.s32.totalorder %v80, 4
  %v103 = vsel %vm99, %v83, %v86
  %v104 = vsel %vm102, %v92, 2102212464
  %v105 = vsel %vm101, %v89, %v104
  %v106 = vsel %vm100, %v103, %v105
  %v107 = vsel %vm99, %v86, %v89
  %v108 = vsel %vm102, %v95, 920167782
  %v109 = vsel %vm101, %v92, %v108
  %v110 = vsel %vm100, %v107, %v109
  %v111 = vsel %vm99, %v89, %v92
  %v112 = vsel %vm102, %v98, 1326507024
  %v113 = vsel %vm101, %v95, %v112
  %v114 = vsel %vm100, %v111, %v113
  %v115 = vshll.u32 %v75, 8
  %v116 = vmul.u32.u64.compose %v115, %v114
  %v117 = vextract.low.u32 %v116
  %v118 = vextract.high.u32 %v116
  %v119 = vmul.u32.u64.compose %v115, %v110
  %v120 = vextract.low.u32 %v119
  %v121 = vextract.high.u32 %v119
  %v122 = vmul.u32 %v115, %v106
  %v123 = vadd.s32 %v118, %v120
  %vm124 = vc.u32 %v118, %v120
  %v125 = vadd.s32 %v121, 1
  %v126 = vsel %vm124, %v125, %v121
  %v127 = vadd.s32 %v122, %v126
  %v128 = vadd.s32 %v127, 536870912
  %v129 = vshrl.u32 %v128, 30
  %v130 = vshll.u32 %v129, 30
  %v131 = vsub.s32 %v127, %v130
  %vm132 = vcmp.lt.s32.totalorder %v131, 0
  %v133 = vsub.s32 0, %v131
  %v134 = vsel %vm132, %v133, %v131
  %v135 = vclz %v134
  %v136 = vsub.s32 %v135, 2
  %vm137 = vcmp.gt.s32.totalorder 0, %v136
  %v138 = vsel %vm137, 0, %v136
  %v139 = vsub.s32 32, %v138
  %v140 = vshll.u32 %v131, %v138
  %v141 = vshrl.u32 %v123, %v139
  %v142 = vor.u32 %v140, %v141
  %v143 = vsub.s32 4294967266, %v138
  %v144 = vadd.s32 %v143, 127
  %v145 = vshll.u32 %v144, 23
  %v146 = vor.u32 4788187, %v145
  %v147 = vand.u32 2147483647, %v146
  %v149 = vcvt.s32.f32 %v142
  %v150 = vmul.f32 %v149, %v147
  %v151 = vxor.u32 %v150, 2147483648
  %v152 = vsel %vm69, %v151, %v150
  %v153 = vsub.s32 4, %v129
  %v154 = vsel %vm69, %v153, %v129
  %v155 = vsel %vm68, %v60, %v152
  %v156 = vsel %vm68, 0, %v154
  %v157 = vcosq.f32.pop %v155
  %v158 = vsinq.f32.pop %v155
  %vm159 = vweird.f32 %v60
  %v160 = vand.u32 %v156, 3
  %vm161 = vcmp.lt.s32.totalorder %v160, 2
  %vm162 = vcmp.eq.s32.totalorder %v160, 0
  %v163 = vxor.u32 %v158, 2147483648
  %v164 = vsel %vm162, %v157, %v163
  %vm165 = vcmp.eq.s32.totalorder %v160, 2
  %v166 = vxor.u32 %v157, 2147483648
  %v167 = vsel %vm165, %v166, %v158
  %v168 = vsel %vm161, %v164, %v167
  %v169 = vsel %vm159, nan, %v168
  %v170 = vand.u32 2147483647, %v61
  %vm171 = vcmp.le.f32.partialorder %v170, 0.7853982
  %vm172 = vcmp.lt.s32.totalorder %v61, 0
  %v173 = vand.u32 %v61, 2139095040
  %v174 = vshrl.u32 %v173, 23
  %v175 = vsub.s32 %v174, 127
  %v176 = vand.u32 2147483647, %v61
  %v177 = vand.u32 %v176, 8388607
  %v178 = vor.u32 %v177, 8388608
  %v179 = vsub.s32 0, %v178
  %v180 = vadd.s32 %v175, 1
  %vm181 = vcmp.gt.s32.totalorder %v180, 0
  %v182 = vsel %vm181, %v180, 0
  %v183 = vshrl.u32 %v182, 5
  %v184 = vand.u32 %v182, 31
  %v185 = vsub.s32 32, %v184
  %v186 = vshrl.u32 683565275, %v185
  %v187 = vshll.u32 683565275, %v184
  %v188 = vshrl.u32 2475754826, %v185
  %v189 = vor.u32 %v187, %v188
  %v190 = vshll.u32 2475754826, %v184
  %v191 = vshrl.u32 2131351028, %v185
  %v192 = vor.u32 %v190, %v191
  %v193 = vshll.u32 2131351028, %v184
  %v194 = vshrl.u32 2102212464, %v185
  %v195 = vor.u32 %v193, %v194
  %v196 = vshll.u32 2102212464, %v184
  %v197 = vshrl.u32 920167782, %v185
  %v198 = vor.u32 %v196, %v197
  %v199 = vshll.u32 920167782, %v184
  %v200 = vshrl.u32 1326507024, %v185
  %v201 = vor.u32 %v199, %v200
  %vm202 = vcmp.lt.s32.totalorder %v183, 1
  %vm203 = vcmp.lt.s32.totalorder %v183, 2
  %vm204 = vcmp.lt.s32.totalorder %v183, 3
  %vm205 = vcmp.lt.s32.totalorder %v183, 4
  %v206 = vsel %vm202, %v186, %v189
  %v207 = vsel %vm205, %v195, 2102212464
  %v208 = vsel %vm204, %v192, %v207
  %v209 = vsel %vm203, %v206, %v208
  %v210 = vsel %vm202, %v189, %v192
  %v211 = vsel %vm205, %v198, 920167782
  %v212 = vsel %vm204, %v195, %v211
  %v213 = vsel %vm203, %v210, %v212
  %v214 = vsel %vm202, %v192, %v195
  %v215 = vsel %vm205, %v201, 1326507024
  %v216 = vsel %vm204, %v198, %v215
  %v217 = vsel %vm203, %v214, %v216
  %v218 = vshll.u32 %v178, 8
  %v219 = vmul.u32.u64.compose %v218, %v217
  %v220 = vextract.low.u32 %v219
  %v221 = vextract.high.u32 %v219
  %v222 = vmul.u32.u64.compose %v218, %v213
  %v223 = vextract.low.u32 %v222
  %v224 = vextract.high.u32 %v222
  %v225 = vmul.u32 %v218, %v209
  %v226 = vadd.s32 %v221, %v223
  %vm227 = vc.u32 %v221, %v223
  %v228 = vadd.s32 %v224, 1
  %v229 = vsel %vm227, %v228, %v224
  %v230 = vadd.s32 %v225, %v229
  %v231 = vadd.s32 %v230, 536870912
  %v232 = vshrl.u32 %v231, 30
  %v233 = vshll.u32 %v232, 30
  %v234 = vsub.s32 %v230, %v233
  %vm235 = vcmp.lt.s32.totalorder %v234, 0
  %v236 = vsub.s32 0, %v234
  %v237 = vsel %vm235, %v236, %v234
  %v238 = vclz %v237
  %v239 = vsub.s32 %v238, 2
  %vm240 = vcmp.gt.s32.totalorder 0, %v239
  %v241 = vsel %vm240, 0, %v239
  %v242 = vsub.s32 32, %v241
  %v243 = vshll.u32 %v234, %v241
  %v244 = vshrl.u32 %v226, %v242
  %v245 = vor.u32 %v243, %v244
  %v246 = vsub.s32 4294967266, %v241
  %v247 = vadd.s32 %v246, 127
  %v248 = vshll.u32 %v247, 23
  %v249 = vor.u32 4788187, %v248
  %v250 = vand.u32 2147483647, %v249
  %v252 = vcvt.s32.f32 %v245
  %v253 = vmul.f32 %v252, %v250
  %v254 = vxor.u32 %v253, 2147483648
  %v255 = vsel %vm172, %v254, %v253
  %v256 = vsub.s32 4, %v232
  %v257 = vsel %vm172, %v256, %v232
  %v258 = vsel %vm171, %v61, %v255
  %v259 = vsel %vm171, 0, %v257
  %v260 = vcosq.f32.pop %v258
  %v261 = vsinq.f32.pop %v258
  %vm262 = vweird.f32 %v61
  %v263 = vand.u32 %v259, 3
  %vm264 = vcmp.lt.s32.totalorder %v263, 2
  %vm265 = vcmp.eq.s32.totalorder %v263, 0
  %v266 = vxor.u32 %v261, 2147483648
  %v267 = vsel %vm265, %v260, %v266
  %vm268 = vcmp.eq.s32.totalorder %v263, 2
  %v269 = vxor.u32 %v260, 2147483648
  %v270 = vsel %vm268, %v269, %v261
  %v271 = vsel %vm264, %v267, %v270
  %v272 = vsel %vm262, nan, %v271
  %v273 = vand.u32 2147483647, %v62
  %vm274 = vcmp.le.f32.partialorder %v273, 0.7853982
  %vm275 = vcmp.lt.s32.totalorder %v62, 0
  %v276 = vand.u32 %v62, 2139095040
  %v277 = vshrl.u32 %v276, 23
  %v278 = vsub.s32 %v277, 127
  %v279 = vand.u32 2147483647, %v62
  %v280 = vand.u32 %v279, 8388607
  %v281 = vor.u32 %v280, 8388608
  %v282 = vsub.s32 0, %v281
  %v283 = vadd.s32 %v278, 1
  %vm284 = vcmp.gt.s32.totalorder %v283, 0
  %v285 = vsel %vm284, %v283, 0
  %v286 = vshrl.u32 %v285, 5
  %v287 = vand.u32 %v285, 31
  %v288 = vsub.s32 32, %v287
  %v289 = vshrl.u32 683565275, %v288
  %v290 = vshll.u32 683565275, %v287
  %v291 = vshrl.u32 2475754826, %v288
  %v292 = vor.u32 %v290, %v291
  %v293 = vshll.u32 2475754826, %v287
  %v294 = vshrl.u32 2131351028, %v288
  %v295 = vor.u32 %v293, %v294
  %v296 = vshll.u32 2131351028, %v287
  %v297 = vshrl.u32 2102212464, %v288
  %v298 = vor.u32 %v296, %v297
  %v299 = vshll.u32 2102212464, %v287
  %v300 = vshrl.u32 920167782, %v288
  %v301 = vor.u32 %v299, %v300
  %v302 = vshll.u32 920167782, %v287
  %v303 = vshrl.u32 1326507024, %v288
  %v304 = vor.u32 %v302, %v303
  %vm305 = vcmp.lt.s32.totalorder %v286, 1
  %vm306 = vcmp.lt.s32.totalorder %v286, 2
  %vm307 = vcmp.lt.s32.totalorder %v286, 3
  %vm308 = vcmp.lt.s32.totalorder %v286, 4
  %v309 = vsel %vm305, %v289, %v292
  %v310 = vsel %vm308, %v298, 2102212464
  %v311 = vsel %vm307, %v295, %v310
  %v312 = vsel %vm306, %v309, %v311
  %v313 = vsel %vm305, %v292, %v295
  %v314 = vsel %vm308, %v301, 920167782
  %v315 = vsel %vm307, %v298, %v314
  %v316 = vsel %vm306, %v313, %v315
  %v317 = vsel %vm305, %v295, %v298
  %v318 = vsel %vm308, %v304, 1326507024
  %v319 = vsel %vm307, %v301, %v318
  %v320 = vsel %vm306, %v317, %v319
  %v321 = vshll.u32 %v281, 8
  %v322 = vmul.u32.u64.compose %v321, %v320
  %v323 = vextract.low.u32 %v322
  %v324 = vextract.high.u32 %v322
  %v325 = vmul.u32.u64.compose %v321, %v316
  %v326 = vextract.low.u32 %v325
  %v327 = vextract.high.u32 %v325
  %v328 = vmul.u32 %v321, %v312
  %v329 = vadd.s32 %v324, %v326
  %vm330 = vc.u32 %v324, %v326
  %v331 = vadd.s32 %v327, 1
  %v332 = vsel %vm330, %v331, %v327
  %v333 = vadd.s32 %v328, %v332
  %v334 = vadd.s32 %v333, 536870912
  %v335 = vshrl.u32 %v334, 30
  %v336 = vshll.u32 %v335, 30
  %v337 = vsub.s32 %v333, %v336
  %vm338 = vcmp.lt.s32.totalorder %v337, 0
  %v339 = vsub.s32 0, %v337
  %v340 = vsel %vm338, %v339, %v337
  %v341 = vclz %v340
  %v342 = vsub.s32 %v341, 2
  %vm343 = vcmp.gt.s32.totalorder 0, %v342
  %v344 = vsel %vm343, 0, %v342
  %v345 = vsub.s32 32, %v344
  %v346 = vshll.u32 %v337, %v344
  %v347 = vshrl.u32 %v329, %v345
  %v348 = vor.u32 %v346, %v347
  %v349 = vsub.s32 4294967266, %v344
  %v350 = vadd.s32 %v349, 127
  %v351 = vshll.u32 %v350, 23
  %v352 = vor.u32 4788187, %v351
  %v353 = vand.u32 2147483647, %v352
  %v355 = vcvt.s32.f32 %v348
  %v356 = vmul.f32 %v355, %v353
  %v357 = vxor.u32 %v356, 2147483648
  %v358 = vsel %vm275, %v357, %v356
  %v359 = vsub.s32 4, %v335
  %v360 = vsel %vm275, %v359, %v335
  %v361 = vsel %vm274, %v62, %v358
  %v362 = vsel %vm274, 0, %v360
  %v363 = vcosq.f32.pop %v361
  %v364 = vsinq.f32.pop %v361
  %vm365 = vweird.f32 %v62
  %v366 = vand.u32 %v362, 3
  %vm367 = vcmp.lt.s32.totalorder %v366, 2
  %vm368 = vcmp.eq.s32.totalorder %v366, 0
  %v369 = vxor.u32 %v364, 2147483648
  %v370 = vsel %vm368, %v363, %v369
  %vm371 = vcmp.eq.s32.totalorder %v366, 2
  %v372 = vxor.u32 %v363, 2147483648
  %v373 = vsel %vm371, %v372, %v364
  %v374 = vsel %vm367, %v370, %v373
  %v375 = vsel %vm365, nan, %v374
  %v376 = vand.u32 2147483647, %v63
  %vm377 = vcmp.le.f32.partialorder %v376, 0.7853982
  %vm378 = vcmp.lt.s32.totalorder %v63, 0
  %v379 = vand.u32 %v63, 2139095040
  %v380 = vshrl.u32 %v379, 23
  %v381 = vsub.s32 %v380, 127
  %v382 = vand.u32 2147483647, %v63
  %v383 = vand.u32 %v382, 8388607
  %v384 = vor.u32 %v383, 8388608
  %v385 = vsub.s32 0, %v384
  %v386 = vadd.s32 %v381, 1
  %vm387 = vcmp.gt.s32.totalorder %v386, 0
  %v388 = vsel %vm387, %v386, 0
  %v389 = vshrl.u32 %v388, 5
  %v390 = vand.u32 %v388, 31
  %v391 = vsub.s32 32, %v390
  %v392 = vshrl.u32 683565275, %v391
  %v393 = vshll.u32 683565275, %v390
  %v394 = vshrl.u32 2475754826, %v391
  %v395 = vor.u32 %v393, %v394
  %v396 = vshll.u32 2475754826, %v390
  %v397 = vshrl.u32 2131351028, %v391
  %v398 = vor.u32 %v396, %v397
  %v399 = vshll.u32 2131351028, %v390
  %v400 = vshrl.u32 2102212464, %v391
  %v401 = vor.u32 %v399, %v400
  %v402 = vshll.u32 2102212464, %v390
  %v403 = vshrl.u32 920167782, %v391
  %v404 = vor.u32 %v402, %v403
  %v405 = vshll.u32 920167782, %v390
  %v406 = vshrl.u32 1326507024, %v391
  %v407 = vor.u32 %v405, %v406
  %vm408 = vcmp.lt.s32.totalorder %v389, 1
  %vm409 = vcmp.lt.s32.totalorder %v389, 2
  %vm410 = vcmp.lt.s32.totalorder %v389, 3
  %vm411 = vcmp.lt.s32.totalorder %v389, 4
  %v412 = vsel %vm408, %v392, %v395
  %v413 = vsel %vm411, %v401, 2102212464
  %v414 = vsel %vm410, %v398, %v413
  %v415 = vsel %vm409, %v412, %v414
  %v416 = vsel %vm408, %v395, %v398
  %v417 = vsel %vm411, %v404, 920167782
  %v418 = vsel %vm410, %v401, %v417
  %v419 = vsel %vm409, %v416, %v418
  %v420 = vsel %vm408, %v398, %v401
  %v421 = vsel %vm411, %v407, 1326507024
  %v422 = vsel %vm410, %v404, %v421
  %v423 = vsel %vm409, %v420, %v422
  %v424 = vshll.u32 %v384, 8
  %v425 = vmul.u32.u64.compose %v424, %v423
  %v426 = vextract.low.u32 %v425
  %v427 = vextract.high.u32 %v425
  %v428 = vmul.u32.u64.compose %v424, %v419
  %v429 = vextract.low.u32 %v428
  %v430 = vextract.high.u32 %v428
  %v431 = vmul.u32 %v424, %v415
  %v432 = vadd.s32 %v427, %v429
  %vm433 = vc.u32 %v427, %v429
  %v434 = vadd.s32 %v430, 1
  %v435 = vsel %vm433, %v434, %v430
  %v436 = vadd.s32 %v431, %v435
  %v437 = vadd.s32 %v436, 536870912
  %v438 = vshrl.u32 %v437, 30
  %v439 = vshll.u32 %v438, 30
  %v440 = vsub.s32 %v436, %v439
  %vm441 = vcmp.lt.s32.totalorder %v440, 0
  %v442 = vsub.s32 0, %v440
  %v443 = vsel %vm441, %v442, %v440
  %v444 = vclz %v443
  %v445 = vsub.s32 %v444, 2
  %vm446 = vcmp.gt.s32.totalorder 0, %v445
  %v447 = vsel %vm446, 0, %v445
  %v448 = vsub.s32 32, %v447
  %v449 = vshll.u32 %v440, %v447
  %v450 = vshrl.u32 %v432, %v448
  %v451 = vor.u32 %v449, %v450
  %v452 = vsub.s32 4294967266, %v447
  %v453 = vadd.s32 %v452, 127
  %v454 = vshll.u32 %v453, 23
  %v455 = vor.u32 4788187, %v454
  %v456 = vand.u32 2147483647, %v455
  %v458 = vcvt.s32.f32 %v451
  %v459 = vmul.f32 %v458, %v456
  %v460 = vxor.u32 %v459, 2147483648
  %v461 = vsel %vm378, %v460, %v459
  %v462 = vsub.s32 4, %v438
  %v463 = vsel %vm378, %v462, %v438
  %v464 = vsel %vm377, %v63, %v461
  %v465 = vsel %vm377, 0, %v463
  %v466 = vcosq.f32.pop %v464
  %v467 = vsinq.f32.pop %v464
  %vm468 = vweird.f32 %v63
  %v469 = vand.u32 %v465, 3
  %vm470 = vcmp.lt.s32.totalorder %v469, 2
  %vm471 = vcmp.eq.s32.totalorder %v469, 0
  %v472 = vxor.u32 %v467, 2147483648
  %v473 = vsel %vm471, %v466, %v472
  %vm474 = vcmp.eq.s32.totalorder %v469, 2
  %v475 = vxor.u32 %v466, 2147483648
  %v476 = vsel %vm474, %v475, %v467
  %v477 = vsel %vm470, %v473, %v476
  %v478 = vsel %vm468, nan, %v477
  %v479 = vand.u32 2147483647, %v64
  %vm480 = vcmp.le.f32.partialorder %v479, 0.7853982
  %vm481 = vcmp.lt.s32.totalorder %v64, 0
  %v482 = vand.u32 %v64, 2139095040
  %v483 = vshrl.u32 %v482, 23
  %v484 = vsub.s32 %v483, 127
  %v485 = vand.u32 2147483647, %v64
  %v486 = vand.u32 %v485, 8388607
  %v487 = vor.u32 %v486, 8388608
  %v488 = vsub.s32 0, %v487
  %v489 = vadd.s32 %v484, 1
  %vm490 = vcmp.gt.s32.totalorder %v489, 0
  %v491 = vsel %vm490, %v489, 0
  %v492 = vshrl.u32 %v491, 5
  %v493 = vand.u32 %v491, 31
  %v494 = vsub.s32 32, %v493
  %v495 = vshrl.u32 683565275, %v494
  %v496 = vshll.u32 683565275, %v493
  %v497 = vshrl.u32 2475754826, %v494
  %v498 = vor.u32 %v496, %v497
  %v499 = vshll.u32 2475754826, %v493
  %v500 = vshrl.u32 2131351028, %v494
  %v501 = vor.u32 %v499, %v500
  %v502 = vshll.u32 2131351028, %v493
  %v503 = vshrl.u32 2102212464, %v494
  %v504 = vor.u32 %v502, %v503
  %v505 = vshll.u32 2102212464, %v493
  %v506 = vshrl.u32 920167782, %v494
  %v507 = vor.u32 %v505, %v506
  %v508 = vshll.u32 920167782, %v493
  %v509 = vshrl.u32 1326507024, %v494
  %v510 = vor.u32 %v508, %v509
  %vm511 = vcmp.lt.s32.totalorder %v492, 1
  %vm512 = vcmp.lt.s32.totalorder %v492, 2
  %vm513 = vcmp.lt.s32.totalorder %v492, 3
  %vm514 = vcmp.lt.s32.totalorder %v492, 4
  %v515 = vsel %vm511, %v495, %v498
  %v516 = vsel %vm514, %v504, 2102212464
  %v517 = vsel %vm513, %v501, %v516
  %v518 = vsel %vm512, %v515, %v517
  %v519 = vsel %vm511, %v498, %v501
  %v520 = vsel %vm514, %v507, 920167782
  %v521 = vsel %vm513, %v504, %v520
  %v522 = vsel %vm512, %v519, %v521
  %v523 = vsel %vm511, %v501, %v504
  %v524 = vsel %vm514, %v510, 1326507024
  %v525 = vsel %vm513, %v507, %v524
  %v526 = vsel %vm512, %v523, %v525
  %v527 = vshll.u32 %v487, 8
  %v528 = vmul.u32.u64.compose %v527, %v526
  %v529 = vextract.low.u32 %v528
  %v530 = vextract.high.u32 %v528
  %v531 = vmul.u32.u64.compose %v527, %v522
  %v532 = vextract.low.u32 %v531
  %v533 = vextract.high.u32 %v531
  %v534 = vmul.u32 %v527, %v518
  %v535 = vadd.s32 %v530, %v532
  %vm536 = vc.u32 %v530, %v532
  %v537 = vadd.s32 %v533, 1
  %v538 = vsel %vm536, %v537, %v533
  %v539 = vadd.s32 %v534, %v538
  %v540 = vadd.s32 %v539, 536870912
  %v541 = vshrl.u32 %v540, 30
  %v542 = vshll.u32 %v541, 30
  %v543 = vsub.s32 %v539, %v542
  %vm544 = vcmp.lt.s32.totalorder %v543, 0
  %v545 = vsub.s32 0, %v543
  %v546 = vsel %vm544, %v545, %v543
  %v547 = vclz %v546
  %v548 = vsub.s32 %v547, 2
  %vm549 = vcmp.gt.s32.totalorder 0, %v548
  %v550 = vsel %vm549, 0, %v548
  %v551 = vsub.s32 32, %v550
  %v552 = vshll.u32 %v543, %v550
  %v553 = vshrl.u32 %v535, %v551
  %v554 = vor.u32 %v552, %v553
  %v555 = vsub.s32 4294967266, %v550
  %v556 = vadd.s32 %v555, 127
  %v557 = vshll.u32 %v556, 23
  %v558 = vor.u32 4788187, %v557
  %v559 = vand.u32 2147483647, %v558
  %v561 = vcvt.s32.f32 %v554
  %v562 = vmul.f32 %v561, %v559
  %v563 = vxor.u32 %v562, 2147483648
  %v564 = vsel %vm481, %v563, %v562
  %v565 = vsub.s32 4, %v541
  %v566 = vsel %vm481, %v565, %v541
  %v567 = vsel %vm480, %v64, %v564
  %v568 = vsel %vm480, 0, %v566
  %v569 = vcosq.f32.pop %v567
  %v570 = vsinq.f32.pop %v567
  %vm571 = vweird.f32 %v64
  %v572 = vand.u32 %v568, 3
  %vm573 = vcmp.lt.s32.totalorder %v572, 2
  %vm574 = vcmp.eq.s32.totalorder %v572, 0
  %v575 = vxor.u32 %v570, 2147483648
  %v576 = vsel %vm574, %v569, %v575
  %vm577 = vcmp.eq.s32.totalorder %v572, 2
  %v578 = vxor.u32 %v569, 2147483648
  %v579 = vsel %vm577, %v578, %v570
  %v580 = vsel %vm573, %v576, %v579
  %v581 = vsel %vm571, nan, %v580
  %v582 = vand.u32 2147483647, %v65
  %vm583 = vcmp.le.f32.partialorder %v582, 0.7853982
  %vm584 = vcmp.lt.s32.totalorder %v65, 0
  %v585 = vand.u32 %v65, 2139095040
  %v586 = vshrl.u32 %v585, 23
  %v587 = vsub.s32 %v586, 127
  %v588 = vand.u32 2147483647, %v65
  %v589 = vand.u32 %v588, 8388607
  %v590 = vor.u32 %v589, 8388608
  %v591 = vsub.s32 0, %v590
  %v592 = vadd.s32 %v587, 1
  %vm593 = vcmp.gt.s32.totalorder %v592, 0
  %v594 = vsel %vm593, %v592, 0
  %v595 = vshrl.u32 %v594, 5
  %v596 = vand.u32 %v594, 31
  %v597 = vsub.s32 32, %v596
  %v598 = vshrl.u32 683565275, %v597
  %v599 = vshll.u32 683565275, %v596
  %v600 = vshrl.u32 2475754826, %v597
  %v601 = vor.u32 %v599, %v600
  %v602 = vshll.u32 2475754826, %v596
  %v603 = vshrl.u32 2131351028, %v597
  %v604 = vor.u32 %v602, %v603
  %v605 = vshll.u32 2131351028, %v596
  %v606 = vshrl.u32 2102212464, %v597
  %v607 = vor.u32 %v605, %v606
  %v608 = vshll.u32 2102212464, %v596
  %v609 = vshrl.u32 920167782, %v597
  %v610 = vor.u32 %v608, %v609
  %v611 = vshll.u32 920167782, %v596
  %v612 = vshrl.u32 1326507024, %v597
  %v613 = vor.u32 %v611, %v612
  %vm614 = vcmp.lt.s32.totalorder %v595, 1
  %vm615 = vcmp.lt.s32.totalorder %v595, 2
  %vm616 = vcmp.lt.s32.totalorder %v595, 3
  %vm617 = vcmp.lt.s32.totalorder %v595, 4
  %v618 = vsel %vm614, %v598, %v601
  %v619 = vsel %vm617, %v607, 2102212464
  %v620 = vsel %vm616, %v604, %v619
  %v621 = vsel %vm615, %v618, %v620
  %v622 = vsel %vm614, %v601, %v604
  %v623 = vsel %vm617, %v610, 920167782
  %v624 = vsel %vm616, %v607, %v623
  %v625 = vsel %vm615, %v622, %v624
  %v626 = vsel %vm614, %v604, %v607
  %v627 = vsel %vm617, %v613, 1326507024
  %v628 = vsel %vm616, %v610, %v627
  %v629 = vsel %vm615, %v626, %v628
  %v630 = vshll.u32 %v590, 8
  %v631 = vmul.u32.u64.compose %v630, %v629
  %v632 = vextract.low.u32 %v631
  %v633 = vextract.high.u32 %v631
  %v634 = vmul.u32.u64.compose %v630, %v625
  %v635 = vextract.low.u32 %v634
  %v636 = vextract.high.u32 %v634
  %v637 = vmul.u32 %v630, %v621
  %v638 = vadd.s32 %v633, %v635
  %vm639 = vc.u32 %v633, %v635
  %v640 = vadd.s32 %v636, 1
  %v641 = vsel %vm639, %v640, %v636
  %v642 = vadd.s32 %v637, %v641
  %v643 = vadd.s32 %v642, 536870912
  %v644 = vshrl.u32 %v643, 30
  %v645 = vshll.u32 %v644, 30
  %v646 = vsub.s32 %v642, %v645
  %vm647 = vcmp.lt.s32.totalorder %v646, 0
  %v648 = vsub.s32 0, %v646
  %v649 = vsel %vm647, %v648, %v646
  %v650 = vclz %v649
  %v651 = vsub.s32 %v650, 2
  %vm652 = vcmp.gt.s32.totalorder 0, %v651
  %v653 = vsel %vm652, 0, %v651
  %v654 = vsub.s32 32, %v653
  %v655 = vshll.u32 %v646, %v653
  %v656 = vshrl.u32 %v638, %v654
  %v657 = vor.u32 %v655, %v656
  %v658 = vsub.s32 4294967266, %v653
  %v659 = vadd.s32 %v658, 127
  %v660 = vshll.u32 %v659, 23
  %v661 = vor.u32 4788187, %v660
  %v662 = vand.u32 2147483647, %v661
  %v664 = vcvt.s32.f32 %v657
  %v665 = vmul.f32 %v664, %v662
  %v666 = vxor.u32 %v665, 2147483648
  %v667 = vsel %vm584, %v666, %v665
  %v668 = vsub.s32 4, %v644
  %v669 = vsel %vm584, %v668, %v644
  %v670 = vsel %vm583, %v65, %v667
  %v671 = vsel %vm583, 0, %v669
  %v672 = vcosq.f32.pop %v670
  %v673 = vsinq.f32.pop %v670
  %vm674 = vweird.f32 %v65
  %v675 = vand.u32 %v671, 3
  %vm676 = vcmp.lt.s32.totalorder %v675, 2
  %vm677 = vcmp.eq.s32.totalorder %v675, 0
  %v678 = vxor.u32 %v673, 2147483648
  %v679 = vsel %vm677, %v672, %v678
  %vm680 = vcmp.eq.s32.totalorder %v675, 2
  %v681 = vxor.u32 %v672, 2147483648
  %v682 = vsel %vm680, %v681, %v673
  %v683 = vsel %vm676, %v679, %v682
  %v684 = vsel %vm674, nan, %v683
  %v685 = vand.u32 2147483647, %v66
  %vm686 = vcmp.le.f32.partialorder %v685, 0.7853982
  %vm687 = vcmp.lt.s32.totalorder %v66, 0
  %v688 = vand.u32 %v66, 2139095040
  %v689 = vshrl.u32 %v688, 23
  %v690 = vsub.s32 %v689, 127
  %v691 = vand.u32 2147483647, %v66
  %v692 = vand.u32 %v691, 8388607
  %v693 = vor.u32 %v692, 8388608
  %v694 = vsub.s32 0, %v693
  %v695 = vadd.s32 %v690, 1
  %vm696 = vcmp.gt.s32.totalorder %v695, 0
  %v697 = vsel %vm696, %v695, 0
  %v698 = vshrl.u32 %v697, 5
  %v699 = vand.u32 %v697, 31
  %v700 = vsub.s32 32, %v699
  %v701 = vshrl.u32 683565275, %v700
  %v702 = vshll.u32 683565275, %v699
  %v703 = vshrl.u32 2475754826, %v700
  %v704 = vor.u32 %v702, %v703
  %v705 = vshll.u32 2475754826, %v699
  %v706 = vshrl.u32 2131351028, %v700
  %v707 = vor.u32 %v705, %v706
  %v708 = vshll.u32 2131351028, %v699
  %v709 = vshrl.u32 2102212464, %v700
  %v710 = vor.u32 %v708, %v709
  %v711 = vshll.u32 2102212464, %v699
  %v712 = vshrl.u32 920167782, %v700
  %v713 = vor.u32 %v711, %v712
  %v714 = vshll.u32 920167782, %v699
  %v715 = vshrl.u32 1326507024, %v700
  %v716 = vor.u32 %v714, %v715
  %vm717 = vcmp.lt.s32.totalorder %v698, 1
  %vm718 = vcmp.lt.s32.totalorder %v698, 2
  %vm719 = vcmp.lt.s32.totalorder %v698, 3
  %vm720 = vcmp.lt.s32.totalorder %v698, 4
  %v721 = vsel %vm717, %v701, %v704
  %v722 = vsel %vm720, %v710, 2102212464
  %v723 = vsel %vm719, %v707, %v722
  %v724 = vsel %vm718, %v721, %v723
  %v725 = vsel %vm717, %v704, %v707
  %v726 = vsel %vm720, %v713, 920167782
  %v727 = vsel %vm719, %v710, %v726
  %v728 = vsel %vm718, %v725, %v727
  %v729 = vsel %vm717, %v707, %v710
  %v730 = vsel %vm720, %v716, 1326507024
  %v731 = vsel %vm719, %v713, %v730
  %v732 = vsel %vm718, %v729, %v731
  %v733 = vshll.u32 %v693, 8
  %v734 = vmul.u32.u64.compose %v733, %v732
  %v735 = vextract.low.u32 %v734
  %v736 = vextract.high.u32 %v734
  %v737 = vmul.u32.u64.compose %v733, %v728
  %v738 = vextract.low.u32 %v737
  %v739 = vextract.high.u32 %v737
  %v740 = vmul.u32 %v733, %v724
  %v741 = vadd.s32 %v736, %v738
  %vm742 = vc.u32 %v736, %v738
  %v743 = vadd.s32 %v739, 1
  %v744 = vsel %vm742, %v743, %v739
  %v745 = vadd.s32 %v740, %v744
  %v746 = vadd.s32 %v745, 536870912
  %v747 = vshrl.u32 %v746, 30
  %v748 = vshll.u32 %v747, 30
  %v749 = vsub.s32 %v745, %v748
  %vm750 = vcmp.lt.s32.totalorder %v749, 0
  %v751 = vsub.s32 0, %v749
  %v752 = vsel %vm750, %v751, %v749
  %v753 = vclz %v752
  %v754 = vsub.s32 %v753, 2
  %vm755 = vcmp.gt.s32.totalorder 0, %v754
  %v756 = vsel %vm755, 0, %v754
  %v757 = vsub.s32 32, %v756
  %v758 = vshll.u32 %v749, %v756
  %v759 = vshrl.u32 %v741, %v757
  %v760 = vor.u32 %v758, %v759
  %v761 = vsub.s32 4294967266, %v756
  %v762 = vadd.s32 %v761, 127
  %v763 = vshll.u32 %v762, 23
  %v764 = vor.u32 4788187, %v763
  %v765 = vand.u32 2147483647, %v764
  %v767 = vcvt.s32.f32 %v760
  %v768 = vmul.f32 %v767, %v765
  %v769 = vxor.u32 %v768, 2147483648
  %v770 = vsel %vm687, %v769, %v768
  %v771 = vsub.s32 4, %v747
  %v772 = vsel %vm687, %v771, %v747
  %v773 = vsel %vm686, %v66, %v770
  %v774 = vsel %vm686, 0, %v772
  %v775 = vcosq.f32.pop %v773
  %v776 = vsinq.f32.pop %v773
  %vm777 = vweird.f32 %v66
  %v778 = vand.u32 %v774, 3
  %vm779 = vcmp.lt.s32.totalorder %v778, 2
  %vm780 = vcmp.eq.s32.totalorder %v778, 0
  %v781 = vxor.u32 %v776, 2147483648
  %v782 = vsel %vm780, %v775, %v781
  %vm783 = vcmp.eq.s32.totalorder %v778, 2
  %v784 = vxor.u32 %v775, 2147483648
  %v785 = vsel %vm783, %v784, %v776
  %v786 = vsel %vm779, %v782, %v785
  %v787 = vsel %vm777, nan, %v786
  %vm788 = vcmask 261120
  %789 = vst.msk [vmem:[%s2] sm:$0xff] %vm788, %v169
  %790 = vst.msk [vmem:[%s2 + $0x8] sm:$0xff] %vm788, %v272
  %791 = vst.msk [vmem:[%s2 + $0x10] sm:$0xff] %vm788, %v375
  %792 = vst.msk [vmem:[%s2 + $0x18] sm:$0xff] %vm788, %v478
  %793 = vst.msk [vmem:[%s2 + $0x20] sm:$0xff] %vm788, %v581
  %794 = vst.msk [vmem:[%s2 + $0x28] sm:$0xff] %vm788, %v684
  %795 = vst.msk [vmem:[%s2 + $0x30] sm:$0xff] %vm788, %v787
  // Predicated region
  $region10: #{time_encode.1} parent=0 // pred_check
    _
  $region11: #{time_encode.1} parent=0 // pred_check_branch
    %797 = sbr.rel (0) target = $region13
  $region12: #{time_encode.1} parent=0 // pred_region
    _
  $region13: #{time_encode.1} parent=0 // pred_fallthru
    _
  // Predicated region
  $region14: #{time_encode.1} parent=0 // pred_check
    _
  $region15: #{time_encode.1} parent=0 // pred_check_branch
    %799 = sbr.rel (0) target = $region17
  $region16: #{time_encode.1} parent=0 // pred_region
    _
  $region17: #{time_encode.1} parent=0 // pred_fallthru
    _

</llo_original>
